<compile_context>
chip_gen: v7x
topology: tpu7x:2x2x1
jax: 0.10.0
libtpu: 0.0.40
codegen_flags: <defaults>
</compile_context>

<pallas_src>
import math

import jax
import jax.numpy as jnp
from jax.experimental import pallas as pl
from jax.experimental.pallas import tpu as pltpu


# ---------------------------------------------------------------------------
# Parameter setup (the registered buffer in the PyTorch module) — plain JAX.
# Build it ONCE at module init, in the activation dtype.
# ---------------------------------------------------------------------------
def init_positional_encoding(d_model: int, max_len: int,
                             dtype=jnp.float32) -> jnp.ndarray:
    """Deterministic sin/cos table, shape (1, max_len, d_model), in `dtype`."""
    if d_model % 2 != 0:
        # The PyTorch module also fails for odd d_model (shape mismatch on 1::2).
        raise ValueError("d_model must be even")
    position = jnp.arange(0, max_len, dtype=jnp.float32)[:, None]            # (max_len, 1)
    div_term = jnp.exp(
        jnp.arange(0, d_model, 2, dtype=jnp.float32) * (-math.log(10000.0) / d_model)
    )                                                                         # (d_model//2,)
    angles = position * div_term                                              # (max_len, d/2)
    pe = jnp.zeros((max_len, d_model), dtype=jnp.float32)
    pe = pe.at[:, 0::2].set(jnp.sin(angles))
    pe = pe.at[:, 1::2].set(jnp.cos(angles))
    return pe[None, :, :].astype(dtype)                                       # (1, max_len, d)


# ---------------------------------------------------------------------------
# Kernel: broadcasted elementwise add  o = x + pe
# ---------------------------------------------------------------------------
def _add_pe_kernel(x_ref, pe_ref, o_ref):
    # x_ref: (TB, TR, C); pe_ref: (1, TR, C) — broadcast over the batch tile.
    o_ref[...] = (x_ref[...] + pe_ref[...]).astype(o_ref.dtype)


# ---------------------------------------------------------------------------
# Helpers
# ---------------------------------------------------------------------------
_FALLBACK_BYTES = 64 * 1024      # below this, XLA's fused add beats pallas dispatch
_SINGLE_STEP_BYTES = 32 * 1024   # below this, a single grid step is best


def _vmem_capacity_bytes() -> int:
    """Per-TensorCore physical VMEM (generation-aware); conservative fallback."""
    try:
        return int(pltpu.get_tpu_info().vmem_capacity_bytes)
    except Exception:
        return 64 << 20  # v7x has the smallest physical VMEM per TC


def _lane_dense_view(S: int, D: int):
    """Pick (R, C) so (S, D) can be viewed as rows with a lane-dense
    (multiple-of-128) last dim when possible -> full-width unmasked stores."""
    if D % 128 == 0:
        return S, D
    flat = S * D
    for cand in (1024, 512, 256, 128):
        if flat % cand == 0:
            return flat // cand, cand
    # No 128-aligned factorisation: keep original layout (partially masked
    # stores, semantics unchanged).
    return S, D


# ---------------------------------------------------------------------------
# Forward
# ---------------------------------------------------------------------------
def positional_encoding_forward(x: jnp.ndarray, pe: jnp.ndarray,
                                *, force_pallas: bool = False) -> jnp.ndarray:
    """x: (B, S, D); pe: (1, max_len, D). Returns x + pe[:, :S] as (B, S, D)."""
    B, S, D = x.shape
    max_len = pe.shape[1]
    if S > max_len:
        raise ValueError(f"sequence length {S} exceeds positional-encoding max_len {max_len}")
    if pe.shape[2] != D:
        raise ValueError(f"d_model mismatch: x has {D}, pe has {pe.shape[2]}")
    if pe.dtype != x.dtype:
        # Prefer building pe in the activation dtype via init_positional_encoding;
        # this per-call cast re-reads the whole table from HBM.
        pe = pe.astype(x.dtype)

    itemsize = jnp.dtype(x.dtype).itemsize
    total_bytes = B * S * D * itemsize

    # Genuinely tiny inputs: skip pallas_call entirely (dispatch + DMA setup
    # would dominate); semantics identical.
    if total_bytes <= _FALLBACK_BYTES and not force_pallas:
        return x + pe[:, :S, :]

    # Canonical lane-dense view (B, R, C); contiguous reshape, no data movement.
    aligned = (D % 128 == 0)
    R, C = _lane_dense_view(S, D)
    x3 = x.reshape(B, R, C)
    if aligned:
        # No per-call slice: the row-tile index_map restricts reads to [:S].
        pe3 = pe                     # (1, max_len, D)
    else:
        # Unaligned D needs the flattened view; slice is dtype-matched already.
        pe3 = pe[:, :S, :].reshape(1, R, C)

    # Dtype-aware sublane multiple: 8 rows f32, 16 bf16, 32 int8/fp8.
    sublane = max(8, 32 // itemsize)

    cap = _vmem_capacity_bytes()
    # Total live VMEM budget for the 6 double-buffered tiles (x, pe, out):
    # generation-aware, capped so it fits v7x's 64 MiB physical with headroom.
    budget = min(28 << 20, cap // 2)

    if total_bytes <= _SINGLE_STEP_BYTES:
        # Small problems: one grid step covering everything (per-step overhead
        # ~0.35us would otherwise dominate).
        tb, tr = B, R
    else:
        tb = 1
        max_rows = max(1, budget // (6 * C * itemsize))
        if R <= max_rows:
            tr = R
        else:
            tr = min(R, max(sublane, (max_rows // sublane) * sublane))
        # Megacore (v7x has 2 TCs): guarantee >=2 steps along a 'parallel' axis.
        # With B >= 2 the batch axis already provides them; otherwise split rows.
        if B == 1 and tr >= R and R >= 2 * sublane:
            half = -(-R // 2)
            tr = min(R, ((half + sublane - 1) // sublane) * sublane)

    # Grid ordered (row_tiles, batch): batch is the innermost (fastest) axis, so
    # the pe block index is constant across it and its re-DMA is skipped.
    grid = (pl.cdiv(R, tr), pl.cdiv(B, tb))

    # Explicit scoped-VMEM limit: live tiles + headroom, clamped below physical.
    live = (4 * tb + 2) * tr * C * itemsize        # x(2) + out(2) + pe(2) buffers
    vmem_limit = int(min(cap - (8 << 20), max(32 << 20, live + (8 << 20))))

    cost = pl.CostEstimate(
        flops=B * S * D,
        transcendentals=0,
        bytes_accessed=2 * total_bytes + S * D * itemsize,
    )

    out = pl.pallas_call(
        _add_pe_kernel,
        out_shape=jax.ShapeDtypeStruct((B, R, C), x.dtype),
        grid_spec=pltpu.PrefetchScalarGridSpec(
            num_scalar_prefetch=0,
            grid=grid,
            in_specs=[
                pl.BlockSpec((tb, tr, C), lambda r, b: (b, r, 0)),   # x tile
                pl.BlockSpec((1, tr, C), lambda r, b: (0, r, 0)),    # pe tile (batch-invariant)
            ],
            out_specs=pl.BlockSpec((tb, tr, C), lambda r, b: (b, r, 0)),
        ),
        compiler_params=pltpu.CompilerParams(
            dimension_semantics=("parallel", "parallel"),
            vmem_limit_bytes=vmem_limit,
        ),
        cost_estimate=cost,
    )(x3, pe3)

    return out.reshape(B, S, D)


if __name__ == "__main__":
    # --- Test 1: small shapes consistent with the module, forced through the
    # Pallas path (d_model=32, max_len=16, batch=2, seq=8, f32). -------------
    d_model, max_len, B, S = 32, 16, 2, 8
    x = jax.random.normal(jax.random.PRNGKey(0), (B, S, d_model), dtype=jnp.float32)
    pe = init_positional_encoding(d_model, max_len, dtype=jnp.float32)
    out = jax.block_until_ready(positional_encoding_forward(x, pe, force_pallas=True))
    ref = x + pe[:, :S, :]
    assert out.shape == (B, S, d_model)
    assert jnp.allclose(out, ref, atol=1e-6, rtol=1e-6)

    # --- Test 2: same tiny shape through the default path (XLA fallback). ---
    out_fb = jax.block_until_ready(positional_encoding_forward(x, pe))
    assert jnp.allclose(out_fb, ref, atol=1e-6, rtol=1e-6)

    # --- Test 3: bf16 activations, 128-aligned d_model (slice-free pe path,
    # dtype-matched table built at init, batch axis provides >=2 grid steps). -
    d2, max_len2, S2 = 256, 256, 128
    x2 = jax.random.normal(jax.random.PRNGKey(1), (B, S2, d2), dtype=jnp.bfloat16)
    pe2 = init_positional_encoding(d2, max_len2, dtype=jnp.bfloat16)
    out2 = jax.block_until_ready(positional_encoding_forward(x2, pe2))
    ref2 = x2 + pe2[:, :S2, :]
    assert out2.shape == (B, S2, d2)
    assert jnp.allclose(out2.astype(jnp.float32), ref2.astype(jnp.float32),
                        atol=1e-2, rtol=1e-2)

    # --- Test 4: B=1 with a non-tile-aligned sequence length (exercises the
    # forced 2-way row split for megacore and ragged edge blocks). -----------
    d3, max_len3, S3 = 256, 128, 100
    x3 = jax.random.normal(jax.random.PRNGKey(2), (1, S3, d3), dtype=jnp.float32)
    pe3 = init_positional_encoding(d3, max_len3, dtype=jnp.float32)
    out3 = jax.block_until_ready(positional_encoding_forward(x3, pe3))
    ref3 = x3 + pe3[:, :S3, :]
    assert out3.shape == (1, S3, d3)
    assert jnp.allclose(out3, ref3, atol=1e-6, rtol=1e-6)

    print("KERNEL_OK")
</pallas_src>

<mosaic_0001>
module attributes {stable_mosaic.version = 11 : i64} {
  func.func @_add_pe_kernel(%arg0: i32, %arg1: i32, %arg2: memref<2x1x256xf32, #tpu.memory_space<vmem>>, %arg3: memref<1x1x256xf32, #tpu.memory_space<vmem>>, %arg4: memref<2x1x256xf32, #tpu.memory_space<vmem>>) attributes {dimension_semantics = [#tpu.dimension_semantics<parallel>, #tpu.dimension_semantics<parallel>], iteration_bounds = array<i64: 1, 1>, scalar_prefetch = 0 : i64, scratch_operands = 0 : i64, tpu.core_type = #tpu.core_type<tc>, window_params = [{transform_indices = @transform_0, window_bounds = array<i64: 2, 1, 256>}, {transform_indices = @transform_1, window_bounds = array<i64: 1, 1, 256>}, {transform_indices = @transform_2, window_bounds = array<i64: 2, 1, 256>}]} {
    %c0 = arith.constant 0 : index
    %c0_0 = arith.constant 0 : index
    %c0_1 = arith.constant 0 : index
    %0 = vector.load %arg2[%c0, %c0_0, %c0_1] : memref<2x1x256xf32, #tpu.memory_space<vmem>>, vector<2x1x256xf32>
    %c0_2 = arith.constant 0 : index
    %c0_3 = arith.constant 0 : index
    %c0_4 = arith.constant 0 : index
    %1 = vector.load %arg3[%c0_2, %c0_3, %c0_4] : memref<1x1x256xf32, #tpu.memory_space<vmem>>, vector<1x1x256xf32>
    %2 = vector.broadcast %1 : vector<1x1x256xf32> to vector<2x1x256xf32>
    %3 = arith.addf %0, %2 : vector<2x1x256xf32>
    %c0_5 = arith.constant 0 : index
    %c0_6 = arith.constant 0 : index
    %c0_7 = arith.constant 0 : index
    %4 = vector.load %arg4[%c0_5, %c0_6, %c0_7] : memref<2x1x256xf32, #tpu.memory_space<vmem>>, vector<2x1x256xf32>
    tpu.vector_store %arg4[%c0_5, %c0_6, %c0_7], %3 {strides = array<i32>} : memref<2x1x256xf32, #tpu.memory_space<vmem>>, vector<2x1x256xf32>,
    return
  }
  func.func @transform_0(%arg0: i32, %arg1: i32) -> (i32, i32, i32) {
    %c0_i32 = arith.constant 0 : i32
    %c0_i32_0 = arith.constant 0 : i32
    return %arg1, %arg0, %c0_i32 : i32, i32, i32
  }
  func.func @transform_1(%arg0: i32, %arg1: i32) -> (i32, i32, i32) {
    %c0_i32 = arith.constant 0 : i32
    %c0_i32_0 = arith.constant 0 : i32
    %c0_i32_1 = arith.constant 0 : i32
    return %c0_i32, %arg0, %c0_i32_0 : i32, i32, i32
  }
  func.func @transform_2(%arg0: i32, %arg1: i32) -> (i32, i32, i32) {
    %c0_i32 = arith.constant 0 : i32
    %c0_i32_0 = arith.constant 0 : i32
    return %arg1, %arg0, %c0_i32 : i32, i32, i32
  }
}

</mosaic_0001>

<llo_original>
// kernel: tpu_custom_call.1
$region0: #{tpu_custom_call.1}
  #allocation0 [shape = 'u32[]', space=smem, size = 0x4, offset = 0x4, fixed_abs, tag = 'smem constant byte address 0x4 - core index']
  #allocation1 [shape = 'u32[144,128]{1,0:T(1,128)}', space=vmem, size = 0x12000, scoped, tag = 'internal scratch']
  %s0 = inlined_call_operand.hbm [shape: f32[2,1,256], index: 0, kind: input, shape index: {}]
  %s1 = inlined_call_operand.vmem [shape: f32[1,1,256], index: 1, kind: input, shape index: {}]
  %s2 = inlined_call_operand.hbm [shape: f32[2,1,256], index: 2, kind: output, shape index: {}]
  %s3 = sld [smem:[#allocation0]]
  $region22: #{tpu_custom_call.1} parent=0
    _
  %s5 = ssub.s32 1, %s3
  %s6 = scalar_select 0, %s5, %s3
  $region1: #{tpu_custom_call.1} parent=0
    #allocation2 [shape = 'u8[2048]{0}', space=vmem, size = 0x800, scoped, tag = 'input window, operand 0, single buffered']
    #allocation3 [shape = 's32[1]{0}', space=sflag, size = 0x4, scoped, tag = 'scoped memory for tpu_custom_call.1']
    #allocation4 [shape = 's32[1]{0}', space=sflag, size = 0x4, scoped, tag = 'scoped memory for tpu_custom_call.1']
    #allocation5 [shape = 'u8[2048]{0}', space=vmem, size = 0x800, scoped, tag = 'output window, operand 0, single buffered']
    %7 = vsyncpa [#allocation3], 0
    %8 = vsyncpa [#allocation4], 0
    // Predicated region
    $region2: #{tpu_custom_call.1} parent=1 // pred_check
      _
    $region3: #{tpu_custom_call.1} parent=1 // pred_check_branch
      %10 = sbr.rel (0) target = $region5
    $region4: #{tpu_custom_call.1} parent=1 // pred_region
      %s12 = ssub.s32 64, 64
      %13 = vsyncadd [#allocation3], %s12
      %s14 = sshll.u32 [#allocation2], 4
      %s15 = int_to_ptr.vmem [resolvable:$true] %s14
      %20 = dma.hbm_to_vmem [thread:$0]  %s0, 64, %s15, [#allocation3], 32, 32, 2
    $region5: #{tpu_custom_call.1} parent=1 // pred_fallthru
      _
    // Predicated region
    $region6: #{tpu_custom_call.1} parent=1 // pred_check
      _
    $region7: #{tpu_custom_call.1} parent=1 // pred_check_branch
      %22 = sbr.rel (0) target = $region9
    $region8: #{tpu_custom_call.1} parent=1 // pred_region
      _
    $region9: #{tpu_custom_call.1} parent=1 // pred_fallthru
      _
    // Predicated region
    $region10: #{tpu_custom_call.1} parent=1 // pred_check
      _
    $region11: #{tpu_custom_call.1} parent=1 // pred_check_branch
      %24 = sbr.rel (0) target = $region13
    $region12: #{tpu_custom_call.1} parent=1 // pred_region
      %25 = dma.done [#allocation3], 64
    $region13: #{tpu_custom_call.1} parent=1 // pred_fallthru
      _
    %v26 = vld [vmem:[#allocation2] sm:$0x3]
    %v27 = vld [vmem:[#allocation2 + $0x2] sm:$0x3]
    %v28 = vld [vmem:[%s1] sm:$0x3]
    %v29 = vadd.f32 %v26, %v28
    %v30 = vadd.f32 %v27, %v28
    %v31 = vlaneseq
    %vm32 = vcmp.ge.s32.totalorder %v31, 0
    %vm33 = vcmp.lt.s32.totalorder %v31, 256
    %vm34 = vmand %vm32, %vm33
    %35 = vst.msk [vmem:[#allocation5] sm:$0x3] %vm34, %v29
    %36 = vst.msk [vmem:[#allocation5 + $0x2] sm:$0x3] %vm34, %v30
    // Predicated region
    $region14: #{tpu_custom_call.1} parent=1 // pred_check
      _
    $region15: #{tpu_custom_call.1} parent=1 // pred_check_branch
      %38 = sbr.rel (0) target = $region17
    $region16: #{tpu_custom_call.1} parent=1 // pred_region
      %s40 = ssub.s32 64, 64
      %41 = vsyncadd [#allocation4], %s40
      %s42 = sshll.u32 [#allocation5], 4
      %s43 = int_to_ptr.vmem [resolvable:$true] %s42
      %48 = dma.vmem_to_hbm [thread:$0]  %s43, 64, %s2, [#allocation4], 32, 32, 2
    $region17: #{tpu_custom_call.1} parent=1 // pred_fallthru
      _
    // Predicated region
    $region18: #{tpu_custom_call.1} parent=1 // pred_check
      _
    $region19: #{tpu_custom_call.1} parent=1 // pred_check_branch
      %50 = sbr.rel (0) target = $region21
    $region20: #{tpu_custom_call.1} parent=1 // pred_region
      %51 = dma.done [#allocation4], 64
    $region21: #{tpu_custom_call.1} parent=1 // pred_fallthru
      _
    %52 = vsyncpa [#allocation3], 1
    %53 = vsyncpa [#allocation4], 1

</llo_original>
